<compile_context>
chip_gen: v5e
topology: v5e:2x2
jax: 0.10.0
libtpu: 0.0.40
codegen_flags: <defaults>
</compile_context>

<pallas_src>
import functools

import jax
import jax.numpy as jnp
from jax.experimental import pallas as pl
from jax.experimental.pallas import tpu as pltpu

_LANE = 128


def _round_up(x, m):
    return (x + m - 1) // m * m


def _mlp_kernel(x_ref, w1_ref, b1_ref, w2_ref, b2_ref, w3_ref, b3_ref, o_ref,
                *, negative_slope: float, use_leaky_relu: bool):
    """One batch tile of the fused 3-layer MLP. Weights are VMEM-resident."""
    if use_leaky_relu:
        act = lambda h: jnp.where(h > 0, h, h * negative_slope)
    else:
        # NOTE: jnp.where(h > 0, h, h * 0.0) would turn a -inf/NaN pre-activation into NaN.
        act = lambda h: jnp.maximum(h, 0)

    # x arrives unpadded f32 straight from HBM; cast to bf16 right before the MXU.
    x = x_ref[...].astype(jnp.bfloat16)                                   # (TB, F)

    # Layer 1: bf16 MXU matmul, f32 accumulate; bias + act in bf16 (packed VPU on v6e/v7x).
    h1 = jnp.dot(x, w1_ref[...], preferred_element_type=jnp.float32)      # (TB, H_pad) f32
    h1 = act(h1.astype(jnp.bfloat16) + b1_ref[...])                       # (TB, H_pad) bf16

    # Layer 2.
    h2 = jnp.dot(h1, w2_ref[...], preferred_element_type=jnp.float32)
    h2 = act(h2.astype(jnp.bfloat16) + b2_ref[...])

    # Layer 3 (H_pad -> 1): a 1-wide MXU matmul wastes nearly all MXU columns and a (TB, 1)
    # output lowers to masked stores; do a VPU multiply + lane reduction (f32) and write a
    # lane-dense (1, 1, TB) slab instead.  b3 is a scalar read from SMEM.
    out = jnp.sum(h2.astype(jnp.float32) * w3_ref[...], axis=-1) + b3_ref[0]
    o_ref[...] = out.reshape(o_ref.shape).astype(o_ref.dtype)


def _pick_batch_tile(batch):
    if batch <= 2 * _LANE:
        return batch                                  # single small tile; nothing to shard
    # >=2 tiles so the "parallel" batch axis gives v7x's second TensorCore work; big tiles
    # (up to 1024 rows) amortize the ~0.35 us per-grid-step overhead.
    n_tiles = max(2, pl.cdiv(batch, 1024))
    return min(_round_up(pl.cdiv(batch, n_tiles), _LANE), 1024)


def _vmem_limit_bytes(tb, f_in, h_pad):
    """Scoped-VMEM request from the actual buffers (weights single-buffered)."""
    bf16, f32 = 2, 4
    x_tiles = 2 * tb * f_in * f32                      # double-buffered streamed input
    out_tiles = 2 * tb * f32                           # double-buffered output slab
    weights = (f_in * h_pad + h_pad * h_pad + 2 * h_pad) * bf16 + h_pad * f32
    inter = tb * h_pad * (f32 + 2 * bf16)              # f32 dot result + bf16 h1/h2 values
    want = x_tiles + out_tiles + weights + inter + (4 << 20)   # + Mosaic internal scratch
    try:
        # ~51 MiB on v7x (64 MiB physical), ~102 MiB on v5e/v6e (128 MiB physical).
        cap = int(pltpu.get_tpu_info().vmem_capacity_bytes * 0.8)
    except Exception:  # pragma: no cover — conservative cap if the query is unavailable
        cap = 48 * 1024 * 1024
    return int(min(max(want, 16 * 1024 * 1024), cap))


def dense_classifier_forward(x, params, use_leaky_relu=True, batch_tile=None):
    """Pallas forward for DenseClassifier.

    x: (batch, in_features) float32
    params: w1 (F,H), b1 (1,H), w2 (H,H), b2 (1,H), w3 (H,1), b3 (1,1), all float32.
    """
    w1, b1, w2, b2, w3, b3 = (params["w1"], params["b1"], params["w2"],
                              params["b2"], params["w3"], params["b3"])
    batch, f_in = x.shape
    hidden = w1.shape[1]
    h_pad = _round_up(max(hidden, _LANE), _LANE)

    tb = int(batch_tile) if batch_tile is not None else _pick_batch_tile(batch)
    grid = pl.cdiv(batch, tb)

    # Weights padded along H only (zero lanes are exact through ReLU/LeakyReLU and the final
    # reduction) and cast to bf16 once.  x is NOT padded or pre-cast — it streams as f32.
    bf = jnp.bfloat16
    w1p = jnp.zeros((f_in, h_pad), bf).at[:, :hidden].set(w1.astype(bf))
    b1p = jnp.zeros((1, h_pad), bf).at[:, :hidden].set(b1.reshape(1, hidden).astype(bf))
    w2p = jnp.zeros((h_pad, h_pad), bf).at[:hidden, :hidden].set(w2.astype(bf))
    b2p = jnp.zeros((1, h_pad), bf).at[:, :hidden].set(b2.reshape(1, hidden).astype(bf))
    w3p = jnp.zeros((1, h_pad), jnp.float32).at[:, :hidden].set(w3.reshape(1, hidden))
    b3p = b3.reshape(1).astype(jnp.float32)                    # SMEM scalar

    # TODO(synk): for very large hidden (single-buffered W2 approaching ~40-48 MiB on v7x)
    # add a K/N grid axis with an f32 VMEM accumulator instead of holding W2 fully resident.

    kernel = functools.partial(_mlp_kernel, negative_slope=0.01,
                               use_leaky_relu=use_leaky_relu)
    const = lambda i: (0, 0)

    def call(single_buffer_weights):
        wkw = {"pipeline_mode": pl.Buffered(1)} if single_buffer_weights else {}
        in_specs = [
            pl.BlockSpec((tb, f_in), lambda i: (i, 0)),          # x: streamed over batch
            pl.BlockSpec((f_in, h_pad), const, **wkw),           # w1: VMEM-resident
            pl.BlockSpec((1, h_pad), const, **wkw),              # b1 (bf16)
            pl.BlockSpec((h_pad, h_pad), const, **wkw),          # w2
            pl.BlockSpec((1, h_pad), const, **wkw),              # b2 (bf16)
            pl.BlockSpec((1, h_pad), const, **wkw),              # w3 row (f32)
            pl.BlockSpec(memory_space=pltpu.MemorySpace.SMEM),   # b3 scalar
        ]
        return pl.pallas_call(
            kernel,
            out_shape=jax.ShapeDtypeStruct((grid, 1, tb), jnp.float32),
            grid=(grid,),
            in_specs=in_specs,
            out_specs=pl.BlockSpec((1, 1, tb), lambda i: (i, 0, 0)),
            compiler_params=pltpu.CompilerParams(
                dimension_semantics=("parallel",),               # both TCs on v7x when grid >= 2
                vmem_limit_bytes=_vmem_limit_bytes(tb, f_in, h_pad)),
        )(x.astype(jnp.float32), w1p, b1p, w2p, b2p, w3p, b3p)

    try:
        out = call(single_buffer_weights=True)
    except Exception:  # pragma: no cover — fallback if Buffered(1)/pipeline_mode unsupported
        out = call(single_buffer_weights=False)

    # (grid, 1, tb) lane-dense slab -> (batch, 1).  Rows past `batch` in the partial last
    # tile are garbage and sliced away.
    return out.reshape(grid * tb)[:batch].reshape(batch, 1)


def init_params(key, in_features, hidden_features):
    """Deterministic synthetic parameter init (nn.Linear shapes, stored transposed)."""
    ks = jax.random.split(key, 6)
    s1 = 1.0 / jnp.sqrt(in_features)
    s2 = 1.0 / jnp.sqrt(hidden_features)
    return {
        "w1": jax.random.uniform(ks[0], (in_features, hidden_features), jnp.float32, -s1, s1),
        "b1": jax.random.uniform(ks[1], (1, hidden_features), jnp.float32, -s1, s1),
        "w2": jax.random.uniform(ks[2], (hidden_features, hidden_features), jnp.float32, -s2, s2),
        "b2": jax.random.uniform(ks[3], (1, hidden_features), jnp.float32, -s2, s2),
        "w3": jax.random.uniform(ks[4], (hidden_features, 1), jnp.float32, -s2, s2),
        "b3": jax.random.uniform(ks[5], (1, 1), jnp.float32, -s2, s2),
    }


def reference_forward(x, params, use_leaky_relu=True, mirror_kernel=False):
    """Pure-JAX reference. With mirror_kernel=True it reproduces the kernel's bf16 MXU /
    bf16 bias+act / f32 final-reduction steps for a tight numerical check."""
    slope = 0.01
    if use_leaky_relu:
        act = lambda h: jnp.where(h > 0, h, h * slope)
    else:
        act = lambda h: jnp.maximum(h, 0)
    if not mirror_kernel:
        h1 = act(x @ params["w1"] + params["b1"])
        h2 = act(h1 @ params["w2"] + params["b2"])
        return h2 @ params["w3"] + params["b3"]
    bf = jnp.bfloat16
    h1 = jnp.dot(x.astype(bf), params["w1"].astype(bf), preferred_element_type=jnp.float32)
    h1 = act(h1.astype(bf) + params["b1"].astype(bf))
    h2 = jnp.dot(h1, params["w2"].astype(bf), preferred_element_type=jnp.float32)
    h2 = act(h2.astype(bf) + params["b2"].astype(bf))
    out = jnp.sum(h2.astype(jnp.float32) * params["w3"].reshape(1, -1), axis=-1,
                  keepdims=True) + params["b3"]
    return out


if __name__ == "__main__":
    key = jax.random.PRNGKey(0)
    k_x, k_p = jax.random.split(key)

    batch, in_features, hidden_features = 8, 16, 32
    x = jax.random.normal(k_x, (batch, in_features), jnp.float32)
    params = init_params(k_p, in_features, hidden_features)

    for use_leaky_relu in (True, False):
        out = jax.block_until_ready(dense_classifier_forward(x, params, use_leaky_relu))
        assert out.shape == (batch, 1), out.shape
        ref_mirror = reference_forward(x, params, use_leaky_relu, mirror_kernel=True)
        ref_f32 = reference_forward(x, params, use_leaky_relu)
        # Tight vs. a reference that mirrors the kernel's bf16/f32 mixed precision.
        assert jnp.allclose(out, ref_mirror, atol=2e-3, rtol=2e-3), (use_leaky_relu, out, ref_mirror)
        # Loose vs. the pure-f32 PyTorch-equivalent forward.
        assert jnp.allclose(out, ref_f32, atol=5e-2, rtol=5e-2), (use_leaky_relu, out, ref_f32)

    print("KERNEL_OK")
</pallas_src>

<mosaic_0001>
module attributes {stable_mosaic.version = 11 : i64} {
  func.func @_mlp_kernel(%arg0: i32, %arg1: memref<8x16xf32, #tpu.memory_space<vmem>>, %arg2: memref<16x128xbf16, #tpu.memory_space<vmem>>, %arg3: memref<1x128xbf16, #tpu.memory_space<vmem>>, %arg4: memref<128x128xbf16, #tpu.memory_space<vmem>>, %arg5: memref<1x128xbf16, #tpu.memory_space<vmem>>, %arg6: memref<1x128xf32, #tpu.memory_space<vmem>>, %arg7: memref<1xf32, #tpu.memory_space<smem>>, %arg8: memref<1x1x8xf32, #tpu.memory_space<vmem>>) attributes {dimension_semantics = [#tpu.dimension_semantics<parallel>], iteration_bounds = array<i64: 1>, scalar_prefetch = 0 : i64, scratch_operands = 0 : i64, tpu.core_type = #tpu.core_type<tc>, window_params = [{transform_indices = @transform_0, window_bounds = array<i64: 8, 16>}, {pipeline_mode = #tpu.pipeline_mode<synchronous>, transform_indices = @transform_1, window_bounds = array<i64: 16, 128>}, {pipeline_mode = #tpu.pipeline_mode<synchronous>, transform_indices = @transform_2, window_bounds = array<i64: 1, 128>}, {pipeline_mode = #tpu.pipeline_mode<synchronous>, transform_indices = @transform_3, window_bounds = array<i64: 128, 128>}, {pipeline_mode = #tpu.pipeline_mode<synchronous>, transform_indices = @transform_4, window_bounds = array<i64: 1, 128>}, {pipeline_mode = #tpu.pipeline_mode<synchronous>, transform_indices = @transform_5, window_bounds = array<i64: 1, 128>}, {transform_indices = @transform_6, window_bounds = array<i64: 1>}, {transform_indices = @transform_7, window_bounds = array<i64: 1, 1, 8>}]} {
    %c0 = arith.constant 0 : index
    %c0_0 = arith.constant 0 : index
    %0 = vector.load %arg1[%c0, %c0_0] : memref<8x16xf32, #tpu.memory_space<vmem>>, vector<8x16xf32>
    %1 = arith.truncf %0 : vector<8x16xf32> to vector<8x16xbf16>
    %c0_1 = arith.constant 0 : index
    %c0_2 = arith.constant 0 : index
    %2 = vector.load %arg2[%c0_1, %c0_2] : memref<16x128xbf16, #tpu.memory_space<vmem>>, vector<16x128xbf16>
    %cst = arith.constant dense<0.000000e+00> : vector<8x128xf32>
    %3 = tpu.matmul %1, %2, %cst {dimension_numbers = #tpu.dot_dimension_numbers<[1], [0], [0], [1], [0, 0, 1, 1], [], []>} : vector<8x16xbf16>, vector<16x128xbf16>, vector<8x128xf32> -> vector<8x128xf32>
    %4 = arith.truncf %3 : vector<8x128xf32> to vector<8x128xbf16>
    %c0_3 = arith.constant 0 : index
    %c0_4 = arith.constant 0 : index
    %5 = vector.load %arg3[%c0_3, %c0_4] : memref<1x128xbf16, #tpu.memory_space<vmem>>, vector<1x128xbf16>
    %6 = vector.broadcast %5 : vector<1x128xbf16> to vector<8x128xbf16>
    %7 = arith.addf %4, %6 : vector<8x128xbf16>
    %cst_5 = arith.constant 0.000000e+00 : bf16
    %8 = vector.broadcast %cst_5 : bf16 to vector<8x128xbf16>
    %9 = arith.cmpf ogt, %7, %8 : vector<8x128xbf16>
    %cst_6 = arith.constant 1.000980e-02 : bf16
    %10 = vector.broadcast %cst_6 : bf16 to vector<8x128xbf16>
    %11 = arith.mulf %7, %10 : vector<8x128xbf16>
    %12 = arith.select %9, %7, %11 : vector<8x128xi1>, vector<8x128xbf16>
    %c0_7 = arith.constant 0 : index
    %c0_8 = arith.constant 0 : index
    %13 = vector.load %arg4[%c0_7, %c0_8] : memref<128x128xbf16, #tpu.memory_space<vmem>>, vector<128x128xbf16>
    %cst_9 = arith.constant dense<0.000000e+00> : vector<8x128xf32>
    %14 = tpu.matmul %12, %13, %cst_9 {dimension_numbers = #tpu.dot_dimension_numbers<[1], [0], [0], [1], [0, 0, 1, 1], [], []>} : vector<8x128xbf16>, vector<128x128xbf16>, vector<8x128xf32> -> vector<8x128xf32>
    %15 = arith.truncf %14 : vector<8x128xf32> to vector<8x128xbf16>
    %c0_10 = arith.constant 0 : index
    %c0_11 = arith.constant 0 : index
    %16 = vector.load %arg5[%c0_10, %c0_11] : memref<1x128xbf16, #tpu.memory_space<vmem>>, vector<1x128xbf16>
    %17 = vector.broadcast %16 : vector<1x128xbf16> to vector<8x128xbf16>
    %18 = arith.addf %15, %17 : vector<8x128xbf16>
    %cst_12 = arith.constant 0.000000e+00 : bf16
    %19 = vector.broadcast %cst_12 : bf16 to vector<8x128xbf16>
    %20 = arith.cmpf ogt, %18, %19 : vector<8x128xbf16>
    %cst_13 = arith.constant 1.000980e-02 : bf16
    %21 = vector.broadcast %cst_13 : bf16 to vector<8x128xbf16>
    %22 = arith.mulf %18, %21 : vector<8x128xbf16>
    %23 = arith.select %20, %18, %22 : vector<8x128xi1>, vector<8x128xbf16>
    %24 = arith.extf %23 : vector<8x128xbf16> to vector<8x128xf32>
    %c0_14 = arith.constant 0 : index
    %c0_15 = arith.constant 0 : index
    %25 = vector.load %arg6[%c0_14, %c0_15] : memref<1x128xf32, #tpu.memory_space<vmem>>, vector<1x128xf32>
    %26 = vector.broadcast %25 : vector<1x128xf32> to vector<8x128xf32>
    %27 = arith.mulf %24, %26 : vector<8x128xf32>
    %cst_16 = arith.constant dense<0.000000e+00> : vector<8xf32>
    %28 = vector.multi_reduction <add>, %27, %cst_16 [1] : vector<8x128xf32> to vector<8xf32>
    %c0_17 = arith.constant 0 : index
    %29 = memref.load %arg7[%c0_17] : memref<1xf32, #tpu.memory_space<smem>>
    %30 = vector.broadcast %29 : f32 to vector<8xf32>
    %31 = arith.addf %28, %30 : vector<8xf32>
    %32 = vector.shape_cast %31 : vector<8xf32> to vector<1x1x8xf32>
    %c0_18 = arith.constant 0 : index
    %c0_19 = arith.constant 0 : index
    %c0_20 = arith.constant 0 : index
    %33 = vector.load %arg8[%c0_18, %c0_19, %c0_20] : memref<1x1x8xf32, #tpu.memory_space<vmem>>, vector<1x1x8xf32>
    tpu.vector_store %arg8[%c0_18, %c0_19, %c0_20], %32 {strides = array<i32>} : memref<1x1x8xf32, #tpu.memory_space<vmem>>, vector<1x1x8xf32>,
    return
  }
  func.func @transform_0(%arg0: i32) -> (i32, i32) {
    %c0_i32 = arith.constant 0 : i32
    %c0_i32_0 = arith.constant 0 : i32
    return %arg0, %c0_i32 : i32, i32
  }
  func.func @transform_1(%arg0: i32) -> (i32, i32) {
    %c0_i32 = arith.constant 0 : i32
    %c0_i32_0 = arith.constant 0 : i32
    %c0_i32_1 = arith.constant 0 : i32
    return %c0_i32, %c0_i32_0 : i32, i32
  }
  func.func @transform_2(%arg0: i32) -> (i32, i32) {
    %c0_i32 = arith.constant 0 : i32
    %c0_i32_0 = arith.constant 0 : i32
    %c0_i32_1 = arith.constant 0 : i32
    return %c0_i32, %c0_i32_0 : i32, i32
  }
  func.func @transform_3(%arg0: i32) -> (i32, i32) {
    %c0_i32 = arith.constant 0 : i32
    %c0_i32_0 = arith.constant 0 : i32
    %c0_i32_1 = arith.constant 0 : i32
    return %c0_i32, %c0_i32_0 : i32, i32
  }
  func.func @transform_4(%arg0: i32) -> (i32, i32) {
    %c0_i32 = arith.constant 0 : i32
    %c0_i32_0 = arith.constant 0 : i32
    %c0_i32_1 = arith.constant 0 : i32
    return %c0_i32, %c0_i32_0 : i32, i32
  }
  func.func @transform_5(%arg0: i32) -> (i32, i32) {
    %c0_i32 = arith.constant 0 : i32
    %c0_i32_0 = arith.constant 0 : i32
    %c0_i32_1 = arith.constant 0 : i32
    return %c0_i32, %c0_i32_0 : i32, i32
  }
  func.func @transform_6(%arg0: i32) -> i32 {
    %c0_i32 = arith.constant 0 : i32
    %c0_i32_0 = arith.constant 0 : i32
    return %c0_i32 : i32
  }
  func.func @transform_7(%arg0: i32) -> (i32, i32, i32) {
    %c0_i32 = arith.constant 0 : i32
    %c0_i32_0 = arith.constant 0 : i32
    %c0_i32_1 = arith.constant 0 : i32
    return %arg0, %c0_i32, %c0_i32_0 : i32, i32, i32
  }
}

module attributes {stable_mosaic.version = 11 : i64} {
  func.func @_mlp_kernel(%arg0: i32, %arg1: memref<8x16xf32, #tpu.memory_space<vmem>>, %arg2: memref<16x128xbf16, #tpu.memory_space<vmem>>, %arg3: memref<1x128xbf16, #tpu.memory_space<vmem>>, %arg4: memref<128x128xbf16, #tpu.memory_space<vmem>>, %arg5: memref<1x128xbf16, #tpu.memory_space<vmem>>, %arg6: memref<1x128xf32, #tpu.memory_space<vmem>>, %arg7: memref<1xf32, #tpu.memory_space<smem>>, %arg8: memref<1x1x8xf32, #tpu.memory_space<vmem>>) attributes {dimension_semantics = [#tpu.dimension_semantics<parallel>], iteration_bounds = array<i64: 1>, scalar_prefetch = 0 : i64, scratch_operands = 0 : i64, tpu.core_type = #tpu.core_type<tc>, window_params = [{transform_indices = @transform_0, window_bounds = array<i64: 8, 16>}, {pipeline_mode = #tpu.pipeline_mode<synchronous>, transform_indices = @transform_1, window_bounds = array<i64: 16, 128>}, {pipeline_mode = #tpu.pipeline_mode<synchronous>, transform_indices = @transform_2, window_bounds = array<i64: 1, 128>}, {pipeline_mode = #tpu.pipeline_mode<synchronous>, transform_indices = @transform_3, window_bounds = array<i64: 128, 128>}, {pipeline_mode = #tpu.pipeline_mode<synchronous>, transform_indices = @transform_4, window_bounds = array<i64: 1, 128>}, {pipeline_mode = #tpu.pipeline_mode<synchronous>, transform_indices = @transform_5, window_bounds = array<i64: 1, 128>}, {transform_indices = @transform_6, window_bounds = array<i64: 1>}, {transform_indices = @transform_7, window_bounds = array<i64: 1, 1, 8>}]} {
    %c0 = arith.constant 0 : index
    %c0_0 = arith.constant 0 : index
    %0 = vector.load %arg1[%c0, %c0_0] : memref<8x16xf32, #tpu.memory_space<vmem>>, vector<8x16xf32>
    %1 = arith.truncf %0 : vector<8x16xf32> to vector<8x16xbf16>
    %c0_1 = arith.constant 0 : index
    %c0_2 = arith.constant 0 : index
    %2 = vector.load %arg2[%c0_1, %c0_2] : memref<16x128xbf16, #tpu.memory_space<vmem>>, vector<16x128xbf16>
    %cst = arith.constant dense<0.000000e+00> : vector<8x128xf32>
    %3 = tpu.matmul %1, %2, %cst {dimension_numbers = #tpu.dot_dimension_numbers<[1], [0], [0], [1], [0, 0, 1, 1], [], []>} : vector<8x16xbf16>, vector<16x128xbf16>, vector<8x128xf32> -> vector<8x128xf32>
    %4 = arith.truncf %3 : vector<8x128xf32> to vector<8x128xbf16>
    %c0_3 = arith.constant 0 : index
    %c0_4 = arith.constant 0 : index
    %5 = vector.load %arg3[%c0_3, %c0_4] : memref<1x128xbf16, #tpu.memory_space<vmem>>, vector<1x128xbf16>
    %6 = vector.broadcast %5 : vector<1x128xbf16> to vector<8x128xbf16>
    %7 = arith.addf %4, %6 : vector<8x128xbf16>
    %cst_5 = arith.constant 0.000000e+00 : bf16
    %8 = vector.broadcast %cst_5 : bf16 to vector<8x128xbf16>
    %9 = arith.cmpf ogt, %7, %8 : vector<8x128xbf16>
    %cst_6 = arith.constant 1.000980e-02 : bf16
    %10 = vector.broadcast %cst_6 : bf16 to vector<8x128xbf16>
    %11 = arith.mulf %7, %10 : vector<8x128xbf16>
    %12 = arith.select %9, %7, %11 : vector<8x128xi1>, vector<8x128xbf16>
    %c0_7 = arith.constant 0 : index
    %c0_8 = arith.constant 0 : index
    %13 = vector.load %arg4[%c0_7, %c0_8] : memref<128x128xbf16, #tpu.memory_space<vmem>>, vector<128x128xbf16>
    %cst_9 = arith.constant dense<0.000000e+00> : vector<8x128xf32>
    %14 = tpu.matmul %12, %13, %cst_9 {dimension_numbers = #tpu.dot_dimension_numbers<[1], [0], [0], [1], [0, 0, 1, 1], [], []>} : vector<8x128xbf16>, vector<128x128xbf16>, vector<8x128xf32> -> vector<8x128xf32>
    %15 = arith.truncf %14 : vector<8x128xf32> to vector<8x128xbf16>
    %c0_10 = arith.constant 0 : index
    %c0_11 = arith.constant 0 : index
    %16 = vector.load %arg5[%c0_10, %c0_11] : memref<1x128xbf16, #tpu.memory_space<vmem>>, vector<1x128xbf16>
    %17 = vector.broadcast %16 : vector<1x128xbf16> to vector<8x128xbf16>
    %18 = arith.addf %15, %17 : vector<8x128xbf16>
    %cst_12 = arith.constant 0.000000e+00 : bf16
    %19 = vector.broadcast %cst_12 : bf16 to vector<8x128xbf16>
    %20 = arith.cmpf ogt, %18, %19 : vector<8x128xbf16>
    %cst_13 = arith.constant 1.000980e-02 : bf16
    %21 = vector.broadcast %cst_13 : bf16 to vector<8x128xbf16>
    %22 = arith.mulf %18, %21 : vector<8x128xbf16>
    %23 = arith.select %20, %18, %22 : vector<8x128xi1>, vector<8x128xbf16>
    %24 = arith.extf %23 : vector<8x128xbf16> to vector<8x128xf32>
    %c0_14 = arith.constant 0 : index
    %c0_15 = arith.constant 0 : index
    %25 = vector.load %arg6[%c0_14, %c0_15] : memref<1x128xf32, #tpu.memory_space<vmem>>, vector<1x128xf32>
    %26 = vector.broadcast %25 : vector<1x128xf32> to vector<8x128xf32>
    %27 = arith.mulf %24, %26 : vector<8x128xf32>
    %cst_16 = arith.constant dense<0.000000e+00> : vector<8xf32>
    %28 = vector.multi_reduction <add>, %27, %cst_16 [1] : vector<8x128xf32> to vector<8xf32>
    %c0_17 = arith.constant 0 : index
    %29 = memref.load %arg7[%c0_17] : memref<1xf32, #tpu.memory_space<smem>>
    %30 = vector.broadcast %29 : f32 to vector<8xf32>
    %31 = arith.addf %28, %30 : vector<8xf32>
    %32 = vector.shape_cast %31 : vector<8xf32> to vector<1x1x8xf32>
    %c0_18 = arith.constant 0 : index
    %c0_19 = arith.constant 0 : index
    %c0_20 = arith.constant 0 : index
    %33 = vector.load %arg8[%c0_18, %c0_19, %c0_20] : memref<1x1x8xf32, #tpu.memory_space<vmem>>, vector<1x1x8xf32>
    tpu.vector_store %arg8[%c0_18, %c0_19, %c0_20], %32 {strides = array<i32>} : memref<1x1x8xf32, #tpu.memory_space<vmem>>, vector<1x1x8xf32>,
    return
  }
  func.func @transform_0(%arg0: i32) -> (i32, i32) {
    %c0_i32 = arith.constant 0 : i32
    %c0_i32_0 = arith.constant 0 : i32
    return %arg0, %c0_i32 : i32, i32
  }
  func.func @transform_1(%arg0: i32) -> (i32, i32) {
    %c0_i32 = arith.constant 0 : i32
    %c0_i32_0 = arith.constant 0 : i32
    %c0_i32_1 = arith.constant 0 : i32
    return %c0_i32, %c0_i32_0 : i32, i32
  }
  func.func @transform_2(%arg0: i32) -> (i32, i32) {
    %c0_i32 = arith.constant 0 : i32
    %c0_i32_0 = arith.constant 0 : i32
    %c0_i32_1 = arith.constant 0 : i32
    return %c0_i32, %c0_i32_0 : i32, i32
  }
  func.func @transform_3(%arg0: i32) -> (i32, i32) {
    %c0_i32 = arith.constant 0 : i32
    %c0_i32_0 = arith.constant 0 : i32
    %c0_i32_1 = arith.constant 0 : i32
    return %c0_i32, %c0_i32_0 : i32, i32
  }
  func.func @transform_4(%arg0: i32) -> (i32, i32) {
    %c0_i32 = arith.constant 0 : i32
    %c0_i32_0 = arith.constant 0 : i32
    %c0_i32_1 = arith.constant 0 : i32
    return %c0_i32, %c0_i32_0 : i32, i32
  }
  func.func @transform_5(%arg0: i32) -> (i32, i32) {
    %c0_i32 = arith.constant 0 : i32
    %c0_i32_0 = arith.constant 0 : i32
    %c0_i32_1 = arith.constant 0 : i32
    return %c0_i32, %c0_i32_0 : i32, i32
  }
  func.func @transform_6(%arg0: i32) -> i32 {
    %c0_i32 = arith.constant 0 : i32
    %c0_i32_0 = arith.constant 0 : i32
    return %c0_i32 : i32
  }
  func.func @transform_7(%arg0: i32) -> (i32, i32, i32) {
    %c0_i32 = arith.constant 0 : i32
    %c0_i32_0 = arith.constant 0 : i32
    %c0_i32_1 = arith.constant 0 : i32
    return %arg0, %c0_i32, %c0_i32_0 : i32, i32, i32
  }
}

</mosaic_0001>

<llo_original>
// kernel: tpu_custom_call.1
$region0: #{tpu_custom_call.1}
  #allocation0 [shape = 'u32[]', space=smem, size = 0x4, offset = 0x4, fixed_abs, tag = 'smem constant byte address 0x4 - core index']
  #allocation1 [shape = 'u32[72,128]{1,0:T(1,128)}', space=vmem, size = 0x9000, scoped, tag = 'internal scratch']
  #allocation2 [shape = 'f32[1]{0:T(128)S(6)}', space=smem, size = 0x200, scoped, tag = 'scoped memory for tpu_custom_call.1']
  %s0 = inlined_call_operand.hbm [shape: f32[8,16], index: 0, kind: input, shape index: {}]
  %s1 = inlined_call_operand.hbm [shape: bf16[16,128], index: 1, kind: input, shape index: {}]
  %s2 = inlined_call_operand.vmem [shape: bf16[1,128], index: 2, kind: input, shape index: {}]
  %s3 = inlined_call_operand.hbm [shape: bf16[128,128], index: 3, kind: input, shape index: {}]
  %s4 = inlined_call_operand.vmem [shape: bf16[1,128], index: 4, kind: input, shape index: {}]
  %s5 = inlined_call_operand.vmem [shape: f32[1,128], index: 5, kind: input, shape index: {}]
  %s6 = inlined_call_operand.<no memory space> [shape: f32[1], index: 6, kind: input, shape index: {}]
  %s7 = inlined_call_operand.hbm [shape: f32[1,1,8], index: 7, kind: output, shape index: {}]
  %s8 = sld [smem:[#allocation0]]
  $region50: #{tpu_custom_call.1} parent=0
    _
  %s10 = ssub.s32 1, %s8
  %s11 = scalar_select 0, %s10, %s8
  %12 = sst [smem:[#allocation2]] %s6
  $region1: #{tpu_custom_call.1} parent=0
    #allocation3 [shape = 'u8[4096]{0}', space=vmem, size = 0x1000, scoped, tag = 'input window, operand 0, single buffered']
    #allocation4 [shape = 's32[1]{0}', space=sflag, size = 0x4, scoped, tag = 'scoped memory for tpu_custom_call.1']
    #allocation5 [shape = 's32[1]{0}', space=sflag, size = 0x4, scoped, tag = 'scoped memory for tpu_custom_call.1']
    #allocation6 [shape = 'u8[4096]{0}', space=vmem, size = 0x1000, scoped, tag = 'input window, operand 1, single buffered']
    #allocation7 [shape = 's32[1]{0}', space=sflag, size = 0x4, scoped, tag = 'scoped memory for tpu_custom_call.1']
    #allocation8 [shape = 'u8[32768]{0}', space=vmem, size = 0x8000, scoped, tag = 'input window, operand 3, single buffered']
    #allocation9 [shape = 'u8[512]{0}', space=vmem, size = 0x400, scoped, tag = 'output window, operand 0, single buffered']
    %13 = vsyncpa [#allocation4], 0
    %14 = vsyncpa [#allocation7], 0
    %15 = vsyncpa [#allocation5], 0
    // Predicated region
    $region2: #{tpu_custom_call.1} parent=1 // pred_check
      _
    $region3: #{tpu_custom_call.1} parent=1 // pred_check_branch
      %17 = sbr.rel (0) target = $region5
    $region4: #{tpu_custom_call.1} parent=1 // pred_region
      %19 = vsyncadd [#allocation4], 0
      %s21 = sshll.u32 %s0, 4
      %s22 = int_to_ptr.hbm [resolvable:$true] %s21
      %s23 = sshll.u32 [#allocation3], 4
      %s24 = int_to_ptr.vmem [resolvable:$true] %s23
      %26 = dma.hbm_to_vmem [thread:$0]  %s22, 128, %s24, [#allocation4]
    $region5: #{tpu_custom_call.1} parent=1 // pred_fallthru
      _
    // Predicated region
    $region6: #{tpu_custom_call.1} parent=1 // pred_check
      _
    $region7: #{tpu_custom_call.1} parent=1 // pred_check_branch
      %28 = sbr.rel (0) target = $region9
    $region8: #{tpu_custom_call.1} parent=1 // pred_region
      %30 = vsyncadd [#allocation7], 0
      %s31 = sshll.u32 %s1, 4
      %s32 = int_to_ptr.hbm [resolvable:$true] %s31
      %s33 = sshll.u32 [#allocation6], 4
      %s34 = int_to_ptr.vmem [resolvable:$true] %s33
      %39 = dma.hbm_to_vmem [thread:$0]  %s32, 128, %s34, [#allocation7], 64, 64, 4
    $region9: #{tpu_custom_call.1} parent=1 // pred_fallthru
      _
    // Predicated region
    $region10: #{tpu_custom_call.1} parent=1 // pred_check
      _
    $region11: #{tpu_custom_call.1} parent=1 // pred_check_branch
      %41 = sbr.rel (0) target = $region13
    $region12: #{tpu_custom_call.1} parent=1 // pred_region
      _
    $region13: #{tpu_custom_call.1} parent=1 // pred_fallthru
      _
    // Predicated region
    $region14: #{tpu_custom_call.1} parent=1 // pred_check
      _
    $region15: #{tpu_custom_call.1} parent=1 // pred_check_branch
      %43 = sbr.rel (0) target = $region17
    $region16: #{tpu_custom_call.1} parent=1 // pred_region
      %45 = vsyncadd [#allocation7], 0
      %s46 = sshll.u32 %s3, 4
      %s47 = int_to_ptr.hbm [resolvable:$true] %s46
      %s48 = sshll.u32 [#allocation8], 4
      %s49 = int_to_ptr.vmem [resolvable:$true] %s48
      %54 = dma.hbm_to_vmem [thread:$0]  %s47, 1024, %s49, [#allocation7], 64, 64, 4
    $region17: #{tpu_custom_call.1} parent=1 // pred_fallthru
      _
    // Predicated region
    $region18: #{tpu_custom_call.1} parent=1 // pred_check
      _
    $region19: #{tpu_custom_call.1} parent=1 // pred_check_branch
      %56 = sbr.rel (0) target = $region21
    $region20: #{tpu_custom_call.1} parent=1 // pred_region
      _
    $region21: #{tpu_custom_call.1} parent=1 // pred_fallthru
      _
    // Predicated region
    $region22: #{tpu_custom_call.1} parent=1 // pred_check
      _
    $region23: #{tpu_custom_call.1} parent=1 // pred_check_branch
      %58 = sbr.rel (0) target = $region25
    $region24: #{tpu_custom_call.1} parent=1 // pred_region
      _
    $region25: #{tpu_custom_call.1} parent=1 // pred_fallthru
      _
    // Predicated region
    $region26: #{tpu_custom_call.1} parent=1 // pred_check
      _
    $region27: #{tpu_custom_call.1} parent=1 // pred_check_branch
      %60 = sbr.rel (0) target = $region29
    $region28: #{tpu_custom_call.1} parent=1 // pred_region
      _
    $region29: #{tpu_custom_call.1} parent=1 // pred_fallthru
      _
    // Predicated region
    $region30: #{tpu_custom_call.1} parent=1 // pred_check
      _
    $region31: #{tpu_custom_call.1} parent=1 // pred_check_branch
      %62 = sbr.rel (0) target = $region33
    $region32: #{tpu_custom_call.1} parent=1 // pred_region
      %64 = dma.done [#allocation4], 128
    $region33: #{tpu_custom_call.1} parent=1 // pred_fallthru
      _
    // Predicated region
    $region34: #{tpu_custom_call.1} parent=1 // pred_check
      _
    $region35: #{tpu_custom_call.1} parent=1 // pred_check_branch
      %66 = sbr.rel (0) target = $region37
    $region36: #{tpu_custom_call.1} parent=1 // pred_region
      %68 = dma.done [#allocation7], 128
    $region37: #{tpu_custom_call.1} parent=1 // pred_fallthru
      _
    // Predicated region
    $region38: #{tpu_custom_call.1} parent=1 // pred_check
      _
    $region39: #{tpu_custom_call.1} parent=1 // pred_check_branch
      %70 = sbr.rel (0) target = $region41
    $region40: #{tpu_custom_call.1} parent=1 // pred_region
      %72 = dma.done [#allocation7], 1024
    $region41: #{tpu_custom_call.1} parent=1 // pred_fallthru
      _
    %v74 = vld [vmem:[#allocation3] sm:$0xff]
    %v75 = vpack.c.bf16 %v74, %v74
    %v76 = vld [vmem:[#allocation6] sm:$0xf]
    %v77 = vld [vmem:[#allocation6 + $0x4] sm:$0xf]
    %v80 = vunpack.c.l.b16 %v76
    %v81 = vunpack.c.l.b16 %v77
    %v82 = vpack.c.b16 %v81, %v80
    %vm84 = vcmask 130048
    %v86 = vsel %vm84, %v75, 0
    %88 = vmatpush.bf16.msra.mxu0 0
    %89 = vmatpush.bf16.msra.mxu0 0
    %90 = vmatpush.bf16.msra.mxu0 0
    %91 = vmatpush.bf16.msra.mxu0 0
    %92 = vmatpush.bf16.msra.mxu0 0
    %93 = vmatpush.bf16.msra.mxu0 0
    %94 = vmatpush.bf16.msra.mxu0 0
    %95 = vmatpush.bf16.msra.mxu0 %v82
    %96 = vmatmul.bf16.gmra.mxu0 %v86
    %v97 = vpop.f32.mrf.mxu0
    %v98 = vadd.f32 0.0, %v97
    %v99 = vpop.f32.mrf.mxu0
    %100 = vdwg.mxu0
    %v101 = vpack.c.bf16 %v98, %v98
    %v102 = vld [vmem:[%s2] sm:$0x1]
    %v104 = vpack.i.b16 %v102, %v102
    %v106 = vperm.slane %v104, 0
    %v107 = vunpack.c.l.bf16 %v101
    %v108 = vunpack.c.l.bf16 %v106
    %v109 = vadd.f32 %v107, %v108
    %v110 = vpack.c.bf16 %v109, %v109
    %v111 = vunpack.c.l.bf16 %v110
    %vm112 = vcmp.gt.f32.partialorder %v111, 0.0
    %v113 = vmul.f32 %v111, 0.010009766
    %v114 = vpack.c.bf16 %v113, %v113
    %vm115 = vmpackc.low %vm112, %vm112
    %v116 = vsel %vm115, %v110, %v114
    %v117 = vld [vmem:[#allocation8] sm:$0xf]
    %v118 = vld [vmem:[#allocation8 + $0x4] sm:$0xf]
    %v119 = vld [vmem:[#allocation8 + $0x8] sm:$0xf]
    %v120 = vld [vmem:[#allocation8 + $0xc] sm:$0xf]
    %v121 = vld [vmem:[#allocation8 + $0x10] sm:$0xf]
    %v122 = vld [vmem:[#allocation8 + $0x14] sm:$0xf]
    %v123 = vld [vmem:[#allocation8 + $0x18] sm:$0xf]
    %v124 = vld [vmem:[#allocation8 + $0x1c] sm:$0xf]
    %v125 = vld [vmem:[#allocation8 + $0x20] sm:$0xf]
    %v126 = vld [vmem:[#allocation8 + $0x24] sm:$0xf]
    %v127 = vld [vmem:[#allocation8 + $0x28] sm:$0xf]
    %v128 = vld [vmem:[#allocation8 + $0x2c] sm:$0xf]
    %v129 = vld [vmem:[#allocation8 + $0x30] sm:$0xf]
    %v130 = vld [vmem:[#allocation8 + $0x34] sm:$0xf]
    %v131 = vld [vmem:[#allocation8 + $0x38] sm:$0xf]
    %v132 = vld [vmem:[#allocation8 + $0x3c] sm:$0xf]
    %v149 = vunpack.c.l.b16 %v117
    %v150 = vunpack.c.l.b16 %v118
    %v151 = vunpack.c.l.b16 %v119
    %v152 = vunpack.c.l.b16 %v120
    %v153 = vunpack.c.l.b16 %v121
    %v154 = vunpack.c.l.b16 %v122
    %v155 = vunpack.c.l.b16 %v123
    %v156 = vunpack.c.l.b16 %v124
    %v157 = vunpack.c.l.b16 %v125
    %v158 = vunpack.c.l.b16 %v126
    %v159 = vunpack.c.l.b16 %v127
    %v160 = vunpack.c.l.b16 %v128
    %v161 = vunpack.c.l.b16 %v129
    %v162 = vunpack.c.l.b16 %v130
    %v163 = vunpack.c.l.b16 %v131
    %v164 = vunpack.c.l.b16 %v132
    %v165 = vpack.c.b16 %v150, %v149
    %v166 = vpack.c.b16 %v152, %v151
    %v167 = vpack.c.b16 %v154, %v153
    %v168 = vpack.c.b16 %v156, %v155
    %v169 = vpack.c.b16 %v158, %v157
    %v170 = vpack.c.b16 %v160, %v159
    %v171 = vpack.c.b16 %v162, %v161
    %v172 = vpack.c.b16 %v164, %v163
    %181 = vmatpush.bf16.msra.mxu0 %v172
    %182 = vmatpush.bf16.msra.mxu0 %v171
    %183 = vmatpush.bf16.msra.mxu0 %v170
    %184 = vmatpush.bf16.msra.mxu0 %v169
    %185 = vmatpush.bf16.msra.mxu0 %v168
    %186 = vmatpush.bf16.msra.mxu0 %v167
    %187 = vmatpush.bf16.msra.mxu0 %v166
    %188 = vmatpush.bf16.msra.mxu0 %v165
    %189 = vmatmul.bf16.gmra.mxu0 %v116
    %v190 = vpop.f32.mrf.mxu0
    %v191 = vadd.f32 0.0, %v190
    %v192 = vpop.f32.mrf.mxu0
    %193 = vdwg.mxu0
    %v194 = vpack.c.bf16 %v191, %v191
    %v195 = vld [vmem:[%s4] sm:$0x1]
    %v197 = vpack.i.b16 %v195, %v195
    %v199 = vperm.slane %v197, 0
    %v200 = vunpack.c.l.bf16 %v194
    %v201 = vunpack.c.l.bf16 %v199
    %v202 = vadd.f32 %v200, %v201
    %v203 = vpack.c.bf16 %v202, %v202
    %v204 = vunpack.c.l.bf16 %v203
    %vm205 = vcmp.gt.f32.partialorder %v204, 0.0
    %v206 = vmul.f32 %v204, 0.010009766
    %v207 = vpack.c.bf16 %v206, %v206
    %vm208 = vmpackc.low %vm205, %vm205
    %v209 = vsel %vm208, %v203, %v207
    %v210 = vunpack.c.l.bf16 %v209
    %v211 = vld [vmem:[%s5] sm:$0x1]
    %v213 = vperm.slane %v211, 0
    %v215 = vmul.f32 %v210, %v213
    %216 = vadd.xlane.f32.xlu0 %v215
    %v217 = vpop.xlane.xlu0 %216
    %s218 = sld [smem:[#allocation2]]
    %v219 = vstv %s218
    %v220 = vadd.f32 %v217, %v219
    %v222 = vlaneseq
    %v223 = vand.u32 %v222, 127
    %v224 = vperm.slane %v220, %v223
    %vm226 = vcmask 57344
    %227 = vst.msk [vmem:[#allocation9] sm:$0x1] %vm226, %v224
    // Predicated region
    $region42: #{tpu_custom_call.1} parent=1 // pred_check
      _
    $region43: #{tpu_custom_call.1} parent=1 // pred_check_branch
      %229 = sbr.rel (0) target = $region45
    $region44: #{tpu_custom_call.1} parent=1 // pred_region
      %231 = vsyncadd [#allocation5], 0
      %s233 = sshll.u32 [#allocation9], 4
      %s234 = int_to_ptr.vmem [resolvable:$true] %s233
      %s235 = sshll.u32 %s7, 4
      %s236 = int_to_ptr.hbm [resolvable:$true] %s235
      %238 = dma.vmem_to_hbm [thread:$0]  %s234, 16, %s236, [#allocation5]
    $region45: #{tpu_custom_call.1} parent=1 // pred_fallthru
      _
    // Predicated region
    $region46: #{tpu_custom_call.1} parent=1 // pred_check
      _
    $region47: #{tpu_custom_call.1} parent=1 // pred_check_branch
      %240 = sbr.rel (0) target = $region49
    $region48: #{tpu_custom_call.1} parent=1 // pred_region
      %242 = dma.done [#allocation5], 16
    $region49: #{tpu_custom_call.1} parent=1 // pred_fallthru
      _
    %243 = vsyncpa [#allocation4], 1
    %244 = vsyncpa [#allocation7], 1
    %245 = vsyncpa [#allocation5], 1

// kernel: tpu_custom_call.1
$region0: #{tpu_custom_call.1}
  #allocation0 [shape = 'u32[]', space=smem, size = 0x4, offset = 0x4, fixed_abs, tag = 'smem constant byte address 0x4 - core index']
  #allocation1 [shape = 'u32[72,128]{1,0:T(1,128)}', space=vmem, size = 0x9000, scoped, tag = 'internal scratch']
  #allocation2 [shape = 'f32[1]{0:T(128)S(6)}', space=smem, size = 0x200, scoped, tag = 'scoped memory for tpu_custom_call.1']
  %s0 = inlined_call_operand.hbm [shape: f32[8,16], index: 0, kind: input, shape index: {}]
  %s1 = inlined_call_operand.hbm [shape: bf16[16,128], index: 1, kind: input, shape index: {}]
  %s2 = inlined_call_operand.vmem [shape: bf16[1,128], index: 2, kind: input, shape index: {}]
  %s3 = inlined_call_operand.hbm [shape: bf16[128,128], index: 3, kind: input, shape index: {}]
  %s4 = inlined_call_operand.vmem [shape: bf16[1,128], index: 4, kind: input, shape index: {}]
  %s5 = inlined_call_operand.vmem [shape: f32[1,128], index: 5, kind: input, shape index: {}]
  %s6 = inlined_call_operand.<no memory space> [shape: f32[1], index: 6, kind: input, shape index: {}]
  %s7 = inlined_call_operand.hbm [shape: f32[1,1,8], index: 7, kind: output, shape index: {}]
  %s8 = sld [smem:[#allocation0]]
  $region50: #{tpu_custom_call.1} parent=0
    _
  %s10 = ssub.s32 1, %s8
  %s11 = scalar_select 0, %s10, %s8
  %12 = sst [smem:[#allocation2]] %s6
  $region1: #{tpu_custom_call.1} parent=0
    #allocation3 [shape = 'u8[4096]{0}', space=vmem, size = 0x1000, scoped, tag = 'input window, operand 0, single buffered']
    #allocation4 [shape = 's32[1]{0}', space=sflag, size = 0x4, scoped, tag = 'scoped memory for tpu_custom_call.1']
    #allocation5 [shape = 's32[1]{0}', space=sflag, size = 0x4, scoped, tag = 'scoped memory for tpu_custom_call.1']
    #allocation6 [shape = 'u8[4096]{0}', space=vmem, size = 0x1000, scoped, tag = 'input window, operand 1, single buffered']
    #allocation7 [shape = 's32[1]{0}', space=sflag, size = 0x4, scoped, tag = 'scoped memory for tpu_custom_call.1']
    #allocation8 [shape = 'u8[32768]{0}', space=vmem, size = 0x8000, scoped, tag = 'input window, operand 3, single buffered']
    #allocation9 [shape = 'u8[512]{0}', space=vmem, size = 0x400, scoped, tag = 'output window, operand 0, single buffered']
    %13 = vsyncpa [#allocation4], 0
    %14 = vsyncpa [#allocation7], 0
    %15 = vsyncpa [#allocation5], 0
    // Predicated region
    $region2: #{tpu_custom_call.1} parent=1 // pred_check
      _
    $region3: #{tpu_custom_call.1} parent=1 // pred_check_branch
      %17 = sbr.rel (0) target = $region5
    $region4: #{tpu_custom_call.1} parent=1 // pred_region
      %19 = vsyncadd [#allocation4], 0
      %s21 = sshll.u32 %s0, 4
      %s22 = int_to_ptr.hbm [resolvable:$true] %s21
      %s23 = sshll.u32 [#allocation3], 4
      %s24 = int_to_ptr.vmem [resolvable:$true] %s23
      %26 = dma.hbm_to_vmem [thread:$0]  %s22, 128, %s24, [#allocation4]
    $region5: #{tpu_custom_call.1} parent=1 // pred_fallthru
      _
    // Predicated region
    $region6: #{tpu_custom_call.1} parent=1 // pred_check
      _
    $region7: #{tpu_custom_call.1} parent=1 // pred_check_branch
      %28 = sbr.rel (0) target = $region9
    $region8: #{tpu_custom_call.1} parent=1 // pred_region
      %30 = vsyncadd [#allocation7], 0
      %s31 = sshll.u32 %s1, 4
      %s32 = int_to_ptr.hbm [resolvable:$true] %s31
      %s33 = sshll.u32 [#allocation6], 4
      %s34 = int_to_ptr.vmem [resolvable:$true] %s33
      %39 = dma.hbm_to_vmem [thread:$0]  %s32, 128, %s34, [#allocation7], 64, 64, 4
    $region9: #{tpu_custom_call.1} parent=1 // pred_fallthru
      _
    // Predicated region
    $region10: #{tpu_custom_call.1} parent=1 // pred_check
      _
    $region11: #{tpu_custom_call.1} parent=1 // pred_check_branch
      %41 = sbr.rel (0) target = $region13
    $region12: #{tpu_custom_call.1} parent=1 // pred_region
      _
    $region13: #{tpu_custom_call.1} parent=1 // pred_fallthru
      _
    // Predicated region
    $region14: #{tpu_custom_call.1} parent=1 // pred_check
      _
    $region15: #{tpu_custom_call.1} parent=1 // pred_check_branch
      %43 = sbr.rel (0) target = $region17
    $region16: #{tpu_custom_call.1} parent=1 // pred_region
      %45 = vsyncadd [#allocation7], 0
      %s46 = sshll.u32 %s3, 4
      %s47 = int_to_ptr.hbm [resolvable:$true] %s46
      %s48 = sshll.u32 [#allocation8], 4
      %s49 = int_to_ptr.vmem [resolvable:$true] %s48
      %54 = dma.hbm_to_vmem [thread:$0]  %s47, 1024, %s49, [#allocation7], 64, 64, 4
    $region17: #{tpu_custom_call.1} parent=1 // pred_fallthru
      _
    // Predicated region
    $region18: #{tpu_custom_call.1} parent=1 // pred_check
      _
    $region19: #{tpu_custom_call.1} parent=1 // pred_check_branch
      %56 = sbr.rel (0) target = $region21
    $region20: #{tpu_custom_call.1} parent=1 // pred_region
      _
    $region21: #{tpu_custom_call.1} parent=1 // pred_fallthru
      _
    // Predicated region
    $region22: #{tpu_custom_call.1} parent=1 // pred_check
      _
    $region23: #{tpu_custom_call.1} parent=1 // pred_check_branch
      %58 = sbr.rel (0) target = $region25
    $region24: #{tpu_custom_call.1} parent=1 // pred_region
      _
    $region25: #{tpu_custom_call.1} parent=1 // pred_fallthru
      _
    // Predicated region
    $region26: #{tpu_custom_call.1} parent=1 // pred_check
      _
    $region27: #{tpu_custom_call.1} parent=1 // pred_check_branch
      %60 = sbr.rel (0) target = $region29
    $region28: #{tpu_custom_call.1} parent=1 // pred_region
      _
    $region29: #{tpu_custom_call.1} parent=1 // pred_fallthru
      _
    // Predicated region
    $region30: #{tpu_custom_call.1} parent=1 // pred_check
      _
    $region31: #{tpu_custom_call.1} parent=1 // pred_check_branch
      %62 = sbr.rel (0) target = $region33
    $region32: #{tpu_custom_call.1} parent=1 // pred_region
      %64 = dma.done [#allocation4], 128
    $region33: #{tpu_custom_call.1} parent=1 // pred_fallthru
      _
    // Predicated region
    $region34: #{tpu_custom_call.1} parent=1 // pred_check
      _
    $region35: #{tpu_custom_call.1} parent=1 // pred_check_branch
      %66 = sbr.rel (0) target = $region37
    $region36: #{tpu_custom_call.1} parent=1 // pred_region
      %68 = dma.done [#allocation7], 128
    $region37: #{tpu_custom_call.1} parent=1 // pred_fallthru
      _
    // Predicated region
    $region38: #{tpu_custom_call.1} parent=1 // pred_check
      _
    $region39: #{tpu_custom_call.1} parent=1 // pred_check_branch
      %70 = sbr.rel (0) target = $region41
    $region40: #{tpu_custom_call.1} parent=1 // pred_region
      %72 = dma.done [#allocation7], 1024
    $region41: #{tpu_custom_call.1} parent=1 // pred_fallthru
      _
    %v74 = vld [vmem:[#allocation3] sm:$0xff]
    %v75 = vpack.c.bf16 %v74, %v74
    %v76 = vld [vmem:[#allocation6] sm:$0xf]
    %v77 = vld [vmem:[#allocation6 + $0x4] sm:$0xf]
    %v80 = vunpack.c.l.b16 %v76
    %v81 = vunpack.c.l.b16 %v77
    %v82 = vpack.c.b16 %v81, %v80
    %vm84 = vcmask 130048
    %v86 = vsel %vm84, %v75, 0
    %88 = vmatpush.bf16.msra.mxu0 0
    %89 = vmatpush.bf16.msra.mxu0 0
    %90 = vmatpush.bf16.msra.mxu0 0
    %91 = vmatpush.bf16.msra.mxu0 0
    %92 = vmatpush.bf16.msra.mxu0 0
    %93 = vmatpush.bf16.msra.mxu0 0
    %94 = vmatpush.bf16.msra.mxu0 0
    %95 = vmatpush.bf16.msra.mxu0 %v82
    %96 = vmatmul.bf16.gmra.mxu0 %v86
    %v97 = vpop.f32.mrf.mxu0
    %v98 = vadd.f32 0.0, %v97
    %v99 = vpop.f32.mrf.mxu0
    %100 = vdwg.mxu0
    %v101 = vpack.c.bf16 %v98, %v98
    %v102 = vld [vmem:[%s2] sm:$0x1]
    %v104 = vpack.i.b16 %v102, %v102
    %v106 = vperm.slane %v104, 0
    %v107 = vunpack.c.l.bf16 %v101
    %v108 = vunpack.c.l.bf16 %v106
    %v109 = vadd.f32 %v107, %v108
    %v110 = vpack.c.bf16 %v109, %v109
    %v111 = vunpack.c.l.bf16 %v110
    %vm112 = vcmp.gt.f32.partialorder %v111, 0.0
    %v113 = vmul.f32 %v111, 0.010009766
    %v114 = vpack.c.bf16 %v113, %v113
    %vm115 = vmpackc.low %vm112, %vm112
    %v116 = vsel %vm115, %v110, %v114
    %v117 = vld [vmem:[#allocation8] sm:$0xf]
    %v118 = vld [vmem:[#allocation8 + $0x4] sm:$0xf]
    %v119 = vld [vmem:[#allocation8 + $0x8] sm:$0xf]
    %v120 = vld [vmem:[#allocation8 + $0xc] sm:$0xf]
    %v121 = vld [vmem:[#allocation8 + $0x10] sm:$0xf]
    %v122 = vld [vmem:[#allocation8 + $0x14] sm:$0xf]
    %v123 = vld [vmem:[#allocation8 + $0x18] sm:$0xf]
    %v124 = vld [vmem:[#allocation8 + $0x1c] sm:$0xf]
    %v125 = vld [vmem:[#allocation8 + $0x20] sm:$0xf]
    %v126 = vld [vmem:[#allocation8 + $0x24] sm:$0xf]
    %v127 = vld [vmem:[#allocation8 + $0x28] sm:$0xf]
    %v128 = vld [vmem:[#allocation8 + $0x2c] sm:$0xf]
    %v129 = vld [vmem:[#allocation8 + $0x30] sm:$0xf]
    %v130 = vld [vmem:[#allocation8 + $0x34] sm:$0xf]
    %v131 = vld [vmem:[#allocation8 + $0x38] sm:$0xf]
    %v132 = vld [vmem:[#allocation8 + $0x3c] sm:$0xf]
    %v149 = vunpack.c.l.b16 %v117
    %v150 = vunpack.c.l.b16 %v118
    %v151 = vunpack.c.l.b16 %v119
    %v152 = vunpack.c.l.b16 %v120
    %v153 = vunpack.c.l.b16 %v121
    %v154 = vunpack.c.l.b16 %v122
    %v155 = vunpack.c.l.b16 %v123
    %v156 = vunpack.c.l.b16 %v124
    %v157 = vunpack.c.l.b16 %v125
    %v158 = vunpack.c.l.b16 %v126
    %v159 = vunpack.c.l.b16 %v127
    %v160 = vunpack.c.l.b16 %v128
    %v161 = vunpack.c.l.b16 %v129
    %v162 = vunpack.c.l.b16 %v130
    %v163 = vunpack.c.l.b16 %v131
    %v164 = vunpack.c.l.b16 %v132
    %v165 = vpack.c.b16 %v150, %v149
    %v166 = vpack.c.b16 %v152, %v151
    %v167 = vpack.c.b16 %v154, %v153
    %v168 = vpack.c.b16 %v156, %v155
    %v169 = vpack.c.b16 %v158, %v157
    %v170 = vpack.c.b16 %v160, %v159
    %v171 = vpack.c.b16 %v162, %v161
    %v172 = vpack.c.b16 %v164, %v163
    %181 = vmatpush.bf16.msra.mxu0 %v172
    %182 = vmatpush.bf16.msra.mxu0 %v171
    %183 = vmatpush.bf16.msra.mxu0 %v170
    %184 = vmatpush.bf16.msra.mxu0 %v169
    %185 = vmatpush.bf16.msra.mxu0 %v168
    %186 = vmatpush.bf16.msra.mxu0 %v167
    %187 = vmatpush.bf16.msra.mxu0 %v166
    %188 = vmatpush.bf16.msra.mxu0 %v165
    %189 = vmatmul.bf16.gmra.mxu0 %v116
    %v190 = vpop.f32.mrf.mxu0
    %v191 = vadd.f32 0.0, %v190
    %v192 = vpop.f32.mrf.mxu0
    %193 = vdwg.mxu0
    %v194 = vpack.c.bf16 %v191, %v191
    %v195 = vld [vmem:[%s4] sm:$0x1]
    %v197 = vpack.i.b16 %v195, %v195
    %v199 = vperm.slane %v197, 0
    %v200 = vunpack.c.l.bf16 %v194
    %v201 = vunpack.c.l.bf16 %v199
    %v202 = vadd.f32 %v200, %v201
    %v203 = vpack.c.bf16 %v202, %v202
    %v204 = vunpack.c.l.bf16 %v203
    %vm205 = vcmp.gt.f32.partialorder %v204, 0.0
    %v206 = vmul.f32 %v204, 0.010009766
    %v207 = vpack.c.bf16 %v206, %v206
    %vm208 = vmpackc.low %vm205, %vm205
    %v209 = vsel %vm208, %v203, %v207
    %v210 = vunpack.c.l.bf16 %v209
    %v211 = vld [vmem:[%s5] sm:$0x1]
    %v213 = vperm.slane %v211, 0
    %v215 = vmul.f32 %v210, %v213
    %216 = vadd.xlane.f32.xlu0 %v215
    %v217 = vpop.xlane.xlu0 %216
    %s218 = sld [smem:[#allocation2]]
    %v219 = vstv %s218
    %v220 = vadd.f32 %v217, %v219
    %v222 = vlaneseq
    %v223 = vand.u32 %v222, 127
    %v224 = vperm.slane %v220, %v223
    %vm226 = vcmask 57344
    %227 = vst.msk [vmem:[#allocation9] sm:$0x1] %vm226, %v224
    // Predicated region
    $region42: #{tpu_custom_call.1} parent=1 // pred_check
      _
    $region43: #{tpu_custom_call.1} parent=1 // pred_check_branch
      %229 = sbr.rel (0) target = $region45
    $region44: #{tpu_custom_call.1} parent=1 // pred_region
      %231 = vsyncadd [#allocation5], 0
      %s233 = sshll.u32 [#allocation9], 4
      %s234 = int_to_ptr.vmem [resolvable:$true] %s233
      %s235 = sshll.u32 %s7, 4
      %s236 = int_to_ptr.hbm [resolvable:$true] %s235
      %238 = dma.vmem_to_hbm [thread:$0]  %s234, 16, %s236, [#allocation5]
    $region45: #{tpu_custom_call.1} parent=1 // pred_fallthru
      _
    // Predicated region
    $region46: #{tpu_custom_call.1} parent=1 // pred_check
      _
    $region47: #{tpu_custom_call.1} parent=1 // pred_check_branch
      %240 = sbr.rel (0) target = $region49
    $region48: #{tpu_custom_call.1} parent=1 // pred_region
      %242 = dma.done [#allocation5], 16
    $region49: #{tpu_custom_call.1} parent=1 // pred_fallthru
      _
    %243 = vsyncpa [#allocation4], 1
    %244 = vsyncpa [#allocation7], 1
    %245 = vsyncpa [#allocation5], 1

</llo_original>
